<compile_context>
chip_gen: v7x
topology: tpu7x:2x2x1
jax: 0.10.0
libtpu: 0.0.40
codegen_flags: <defaults>
</compile_context>

<pallas_src>
import functools

import jax
import jax.numpy as jnp
from jax.experimental import pallas as pl
from jax.experimental.pallas import tpu as pltpu

CUTOFF = 5.0


# --------------------------------------------------------------------------- #
# Pallas kernel
# --------------------------------------------------------------------------- #
def _shell_kernel(rt_ref, n_ref, nm_ref, vd_ref, *, ta, shift):
    # rt_ref : (1, 3, A)   float32   R^T for this batch element (full atoms)
    # n_ref  : (1, 1, L)   int32     flattened neighbor ids for this atom tile
    # nm_ref : (1, 1, L)   float32   flattened neighbor mask for this atom tile
    # vd_ref : (1, 4, L)   float32   rows 0..2 = V^T, row 3 = masked D
    # with L = ta * Nn_pad (lane-dense).
    A = rt_ref.shape[2]
    L = n_ref.shape[2]

    RT = rt_ref[0]                      # (3, A)
    n_flat = n_ref[0]                   # (1, L) int32
    nm_flat = nm_ref[0]                 # (1, L) float32

    row_start = pl.program_id(1) * ta   # first atom row of this tile

    # Selector = onehot(neighbor id) - onehot(self id), built directly in the
    # transposed, lane-dense (A, L) layout.  Out-of-range / padding neighbor
    # ids produce an all-zero column (V = -R[self]); those entries are masked
    # by NM downstream, matching the original module's behavior.
    atom_ids = jax.lax.broadcasted_iota(jnp.int32, (A, L), 0)           # (A, L)
    lane_pos = jax.lax.broadcasted_iota(jnp.int32, (1, L), 1)           # (1, L)
    self_ids = row_start + (lane_pos >> shift)                          # (1, L)
    sel = ((atom_ids == n_flat).astype(jnp.float32)
           - (atom_ids == self_ids).astype(jnp.float32))                # (A, L)

    # MXU: lane-dense output (3, L); exact for valid indices (one-hot weights).
    VT = jnp.dot(RT, sel, preferred_element_type=jnp.float32)           # (3, L)

    D = jnp.sqrt(jnp.sum(VT * VT, axis=0, keepdims=True))               # (1, L)
    D = jnp.where(nm_flat != 0.0, D, 0.0)

    vd_ref[0] = jnp.concatenate([VT, D], axis=0)                        # (4, L)


# --------------------------------------------------------------------------- #
# pallas_call wrapper
# --------------------------------------------------------------------------- #
def _choose_atom_tile(A, nn_pad, max_lanes=2048):
    """Pick an atom tile tA: full A if small, else a divisor with tA*Nn_pad % 128 == 0."""
    if A * nn_pad <= max_lanes:
        return A
    for ta in range(min(A, max_lanes // nn_pad), 0, -1):
        if A % ta == 0 and (ta * nn_pad) % 128 == 0:
            return ta
    return A


def _shell_pallas(R, N, NM, *, atom_tile=None):
    """Runs the Pallas kernel; returns (VD (B,4,A*Nn_pad), Nn_pad)."""
    B, A, _ = R.shape
    Nn = N.shape[-1]

    # Pad the neighbor axis to a power of two so the in-kernel self-id
    # computation is a lane-wise shift, and lanes pack more densely.
    nn_pad = int(pl.next_power_of_2(Nn))
    shift = nn_pad.bit_length() - 1
    if nn_pad != Nn:
        pad = ((0, 0), (0, 0), (0, nn_pad - Nn))
        N_in = jnp.pad(N.astype(jnp.int32), pad, constant_values=0)
        NM_in = jnp.pad(NM.astype(jnp.float32), pad, constant_values=0.0)
    else:
        N_in = N.astype(jnp.int32)
        NM_in = NM.astype(jnp.float32)

    ta = atom_tile if atom_tile is not None else _choose_atom_tile(A, nn_pad)
    assert A % ta == 0, "atom_tile must divide A"
    L = ta * nn_pad
    L_full = A * nn_pad

    # Lane-dense input layouts (cheap XLA reshapes / one transpose per call).
    RT = jnp.transpose(R.astype(jnp.float32), (0, 2, 1))      # (B, 3, A)
    N_flat = N_in.reshape(B, 1, L_full)                       # (B, 1, A*Nn_pad)
    NM_flat = NM_in.reshape(B, 1, L_full)                     # (B, 1, A*Nn_pad)

    kernel = functools.partial(_shell_kernel, ta=ta, shift=shift)
    VD = pl.pallas_call(
        kernel,
        out_shape=jax.ShapeDtypeStruct((B, 4, L_full), jnp.float32),
        grid_spec=pltpu.PrefetchScalarGridSpec(
            num_scalar_prefetch=0,
            grid=(B, A // ta),
            in_specs=[
                pl.BlockSpec((1, 3, A), lambda b, i: (b, 0, 0)),   # full R^T
                pl.BlockSpec((1, 1, L), lambda b, i: (b, 0, i)),   # N tile
                pl.BlockSpec((1, 1, L), lambda b, i: (b, 0, i)),   # NM tile
            ],
            out_specs=pl.BlockSpec((1, 4, L), lambda b, i: (b, 0, i)),
        ),
        compiler_params=pltpu.CompilerParams(
            dimension_semantics=("parallel", "parallel"),
            vmem_limit_bytes=32 * 1024 * 1024,   # safe on v5e/v6e/v7x
        ),
    )(RT, N_flat, NM_flat)
    return VD, nn_pad


def _shell_raw(R, N, NM, *, atom_tile=None):
    """Returns (D (B,A,Nn), V (B,A,Nn,3)) in the original module's layout."""
    B, A, _ = R.shape
    Nn = N.shape[-1]
    VD, nn_pad = _shell_pallas(R, N, NM, atom_tile=atom_tile)
    VD = VD.reshape(B, 4, A, nn_pad)[..., :Nn]
    D = VD[:, 3]                                      # (B, A, Nn)
    V = jnp.transpose(VD[:, 0:3], (0, 2, 3, 1))       # (B, A, Nn, 3)
    return D, V


# --------------------------------------------------------------------------- #
# Full forward pass (kernel + static-shaped packing glue), jitted end-to-end
# --------------------------------------------------------------------------- #
@functools.partial(jax.jit, static_argnames=("atom_tile",))
def _shell_provider_static(R, N, NM, cutoff, *, atom_tile=None):
    B, A, _ = R.shape
    Nn = N.shape[-1]

    D, V = _shell_raw(R, N, NM, atom_tile=atom_tile)

    # within-cutoff mask recomputed here (W output was dropped from the kernel)
    within = jnp.logical_and(D < cutoff, NM != 0.0)                 # (B, A, Nn)
    NC = jnp.sum(within.astype(jnp.int32), axis=-1)                 # (B, A)

    # stable argsort: in-cutoff entries first, original neighbor order kept
    order = jnp.argsort((~within).astype(jnp.int32), axis=-1)       # (B, A, Nn)
    keep = jax.lax.broadcasted_iota(jnp.int32, (B, A, Nn), 2) < NC[:, :, None]

    D_p = jnp.where(keep, jnp.take_along_axis(D, order, axis=-1), 0.0)
    N_p = jnp.where(keep, jnp.take_along_axis(N.astype(jnp.int32), order, axis=-1), 0)
    V_p = jnp.where(keep[..., None],
                    jnp.take_along_axis(V, order[..., None], axis=-2), 0.0)
    NM_p = keep.astype(jnp.float32)
    return D_p, V_p, N_p, NM_p


def shell_provider(R, N, NM=None, cutoff=CUTOFF, *, trim=False, atom_tile=None):
    """JAX/Pallas equivalent of ShellProvider.forward.  Returns (D, V, N, NM).

    By default returns static, full-Nn-wide padded outputs (jittable).  Pass
    trim=True to reproduce PyTorch's data-dependent trim to n = NC.max().
    """
    B, A, _ = R.shape
    Nn = N.shape[-1]
    NM_in = (jnp.ones((B, A, Nn), jnp.float32) if NM is None
             else NM.astype(jnp.float32))

    D_p, V_p, N_p, NM_p = _shell_provider_static(
        R.astype(jnp.float32), N.astype(jnp.int32), NM_in, cutoff,
        atom_tile=atom_tile)

    if trim:
        # TODO(synk): dynamic (data-dependent) output shape requires a host
        # sync and breaks jit/vmap of callers; off by default per perf review.
        n = int(jax.device_get(jnp.max(jnp.sum(NM_p, axis=-1))))
        return D_p[:, :, :n], V_p[:, :, :n, :], N_p[:, :, :n], NM_p[:, :, :n]
    return D_p, V_p, N_p, NM_p


# --------------------------------------------------------------------------- #
if __name__ == "__main__":
    def reference(R, N, NM):
        B = R.shape[0]
        R_neigh = R[jnp.arange(B)[:, None, None], N]            # (B, A, Nn, 3)
        V = R_neigh - R[:, :, None, :]
        D = jnp.sqrt(jnp.sum(V * V, axis=-1))
        D = jnp.where(NM != 0.0, D, 0.0)
        return D, V

    # -- small case (single atom tile per batch element) ----------------------
    key = jax.random.PRNGKey(0)
    B, A, Nn = 2, 8, 6
    k1, k2, k3 = jax.random.split(key, 3)
    R = jax.random.normal(k1, (B, A, 3), dtype=jnp.float32) * 2.0
    N = jax.random.randint(k2, (B, A, Nn), 0, A, dtype=jnp.int32)
    NM = jax.random.bernoulli(k3, 0.8, (B, A, Nn)).astype(jnp.float32)

    out = shell_provider(R, N, NM, cutoff=CUTOFF)   # static-shaped, jitted path
    jax.block_until_ready(out)

    D_raw, V_raw = _shell_raw(R, N, NM)
    D_ref, V_ref = reference(R, N, NM)
    assert jnp.allclose(D_raw, D_ref, atol=1e-5), "distance mismatch (small)"
    assert jnp.allclose(V_raw, V_ref, atol=1e-5), "vector mismatch (small)"

    # -- larger case exercising the (B, A//tA) atom-tile grid axis ------------
    B2, A2, Nn2 = 2, 32, 8          # tA=16 -> 16*8 = 128 lanes per output block
    k4, k5, k6 = jax.random.split(jax.random.PRNGKey(1), 3)
    R2 = jax.random.normal(k4, (B2, A2, 3), dtype=jnp.float32) * 2.0
    N2 = jax.random.randint(k5, (B2, A2, Nn2), 0, A2, dtype=jnp.int32)
    NM2 = jax.random.bernoulli(k6, 0.8, (B2, A2, Nn2)).astype(jnp.float32)

    D2_raw, V2_raw = _shell_raw(R2, N2, NM2, atom_tile=16)
    D2_ref, V2_ref = reference(R2, N2, NM2)
    assert jnp.allclose(D2_raw, D2_ref, atol=1e-5), "distance mismatch (tiled)"
    assert jnp.allclose(V2_raw, V2_ref, atol=1e-5), "vector mismatch (tiled)"

    print("KERNEL_OK")
</pallas_src>

<mosaic_0001>
module attributes {stable_mosaic.version = 11 : i64} {
  func.func @_shell_kernel(%arg0: i32, %arg1: i32, %arg2: memref<1x3x8xf32, #tpu.memory_space<vmem>>, %arg3: memref<1x1x64xi32, #tpu.memory_space<vmem>>, %arg4: memref<1x1x64xf32, #tpu.memory_space<vmem>>, %arg5: memref<1x4x64xf32, #tpu.memory_space<vmem>>) attributes {dimension_semantics = [#tpu.dimension_semantics<parallel>, #tpu.dimension_semantics<parallel>], iteration_bounds = array<i64: 2, 1>, scalar_prefetch = 0 : i64, scratch_operands = 0 : i64, tpu.core_type = #tpu.core_type<tc>, window_params = [{transform_indices = @transform_0, window_bounds = array<i64: 1, 3, 8>}, {transform_indices = @transform_1, window_bounds = array<i64: 1, 1, 64>}, {transform_indices = @transform_2, window_bounds = array<i64: 1, 1, 64>}, {transform_indices = @transform_3, window_bounds = array<i64: 1, 4, 64>}]} {
    %c0 = arith.constant 0 : index
    %c0_0 = arith.constant 0 : index
    %c0_1 = arith.constant 0 : index
    %0 = vector.load %arg2[%c0, %c0_0, %c0_1] : memref<1x3x8xf32, #tpu.memory_space<vmem>>, vector<1x3x8xf32>
    %1 = vector.shape_cast %0 : vector<1x3x8xf32> to vector<3x8xf32>
    %c0_2 = arith.constant 0 : index
    %c0_3 = arith.constant 0 : index
    %c0_4 = arith.constant 0 : index
    %2 = vector.load %arg3[%c0_2, %c0_3, %c0_4] : memref<1x1x64xi32, #tpu.memory_space<vmem>>, vector<1x1x64xi32>
    %3 = vector.shape_cast %2 : vector<1x1x64xi32> to vector<1x64xi32>
    %c0_5 = arith.constant 0 : index
    %c0_6 = arith.constant 0 : index
    %c0_7 = arith.constant 0 : index
    %4 = vector.load %arg4[%c0_5, %c0_6, %c0_7] : memref<1x1x64xf32, #tpu.memory_space<vmem>>, vector<1x1x64xf32>
    %5 = vector.shape_cast %4 : vector<1x1x64xf32> to vector<1x64xf32>
    %c8_i32 = arith.constant 8 : i32
    %6 = arith.muli %arg1, %c8_i32 : i32
    %7 = tpu.iota {dimensions = array<i32: 0>} : vector<8x64xi32>
    %8 = tpu.iota {dimensions = array<i32: 1>} : vector<1x64xi32>
    %c3_i32 = arith.constant 3 : i32
    %9 = vector.broadcast %c3_i32 : i32 to vector<1x64xi32>
    %10 = arith.shrsi %8, %9 : vector<1x64xi32>
    %11 = vector.broadcast %6 : i32 to vector<1x64xi32>
    %12 = arith.addi %11, %10 : vector<1x64xi32>
    %13 = vector.broadcast %3 : vector<1x64xi32> to vector<8x64xi32>
    %14 = arith.cmpi eq, %7, %13 : vector<8x64xi32>
    %15 = arith.extui %14 : vector<8x64xi1> to vector<8x64xi32>
    %16 = arith.sitofp %15 : vector<8x64xi32> to vector<8x64xf32>
    %17 = vector.broadcast %12 : vector<1x64xi32> to vector<8x64xi32>
    %18 = arith.cmpi eq, %7, %17 : vector<8x64xi32>
    %19 = arith.extui %18 : vector<8x64xi1> to vector<8x64xi32>
    %20 = arith.sitofp %19 : vector<8x64xi32> to vector<8x64xf32>
    %21 = arith.subf %16, %20 : vector<8x64xf32>
    %cst = arith.constant dense<0.000000e+00> : vector<3x64xf32>
    %22 = tpu.matmul %1, %21, %cst {dimension_numbers = #tpu.dot_dimension_numbers<[1], [0], [0], [1], [0, 0, 1, 1], [], []>} : vector<3x8xf32>, vector<8x64xf32>, vector<3x64xf32> -> vector<3x64xf32>
    %23 = arith.mulf %22, %22 : vector<3x64xf32>
    %cst_8 = arith.constant dense<0.000000e+00> : vector<64xf32>
    %24 = vector.multi_reduction <add>, %23, %cst_8 [0] : vector<3x64xf32> to vector<64xf32>
    %25 = vector.shape_cast %24 : vector<64xf32> to vector<1x64xf32>
    %26 = math.sqrt %25 : vector<1x64xf32>
    %cst_9 = arith.constant 0.000000e+00 : f32
    %27 = vector.broadcast %cst_9 : f32 to vector<1x64xf32>
    %28 = arith.cmpf one, %5, %27 : vector<1x64xf32>
    %cst_10 = arith.constant 0.000000e+00 : f32
    %29 = vector.broadcast %cst_10 : f32 to vector<1x64xf32>
    %30 = arith.select %28, %26, %29 : vector<1x64xi1>, vector<1x64xf32>
    %31 = tpu.concatenate %22, %30 in 0 : vector<3x64xf32>, vector<1x64xf32> -> vector<4x64xf32>
    %c0_11 = arith.constant 0 : index
    %c0_12 = arith.constant 0 : index
    %c0_13 = arith.constant 0 : index
    %32 = vector.load %arg5[%c0_11, %c0_12, %c0_13] : memref<1x4x64xf32, #tpu.memory_space<vmem>>, vector<1x4x64xf32>
    %33 = vector.shape_cast %32 : vector<1x4x64xf32> to vector<4x64xf32>
    %34 = vector.shape_cast %31 : vector<4x64xf32> to vector<1x4x64xf32>
    tpu.vector_store %arg5[%c0_11, %c0_12, %c0_13], %34 {strides = array<i32>} : memref<1x4x64xf32, #tpu.memory_space<vmem>>, vector<1x4x64xf32>,
    return
  }
  func.func @transform_0(%arg0: i32, %arg1: i32) -> (i32, i32, i32) {
    %c0_i32 = arith.constant 0 : i32
    %c0_i32_0 = arith.constant 0 : i32
    %c0_i32_1 = arith.constant 0 : i32
    return %arg0, %c0_i32, %c0_i32_0 : i32, i32, i32
  }
  func.func @transform_1(%arg0: i32, %arg1: i32) -> (i32, i32, i32) {
    %c0_i32 = arith.constant 0 : i32
    %c0_i32_0 = arith.constant 0 : i32
    return %arg0, %c0_i32, %arg1 : i32, i32, i32
  }
  func.func @transform_2(%arg0: i32, %arg1: i32) -> (i32, i32, i32) {
    %c0_i32 = arith.constant 0 : i32
    %c0_i32_0 = arith.constant 0 : i32
    return %arg0, %c0_i32, %arg1 : i32, i32, i32
  }
  func.func @transform_3(%arg0: i32, %arg1: i32) -> (i32, i32, i32) {
    %c0_i32 = arith.constant 0 : i32
    %c0_i32_0 = arith.constant 0 : i32
    return %arg0, %c0_i32, %arg1 : i32, i32, i32
  }
}

</mosaic_0001>

<llo_original>
// kernel: _shell_provider_static.1
$region0: #{_shell_provider_static.1}
  #allocation0 [shape = 'u32[]', space=smem, size = 0x4, offset = 0x4, fixed_abs, tag = 'smem constant byte address 0x4 - core index']
  #allocation1 [shape = 'u32[144,128]{1,0:T(1,128)}', space=vmem, size = 0x12000, scoped, tag = 'internal scratch']
  %s0 = inlined_call_operand.vmem [shape: f32[2,3,8], index: 0, kind: input, shape index: {}]
  %s1 = inlined_call_operand.vmem [shape: s32[2,1,64], index: 1, kind: input, shape index: {}]
  %s2 = inlined_call_operand.vmem [shape: f32[2,1,64], index: 2, kind: input, shape index: {}]
  %s3 = inlined_call_operand.vmem [shape: f32[2,4,64], index: 3, kind: output, shape index: {}]
  %s4 = sld [smem:[#allocation0]]
  $region45: #{_shell_provider_static.1} parent=0
    _
  %s6 = ssub.s32 1, %s4
  %s7 = scalar_select 0, %s6, %s4
  loop: start=0, step=1, limit=4
  $region2: #{_shell_provider_static.1} parent=0 // loop_pre_header
    _
  $region3: #{_shell_provider_static.1} parent=0 // loop_header
    %s9 = sphi 0, %s13
    %p10 = scmp.ge.s32.totalorder %s9, 4
    %s16 = sphi 0, %s28
    %s17 = sphi 0, %s24
    %s18 = sphi 0, %s16
    %s19 = sphi 0, %s17
    %s20 = sphi 0, %s18
    %s21 = sphi 0, %s19
    %s31 = sphi 0, %s33
    %s34 = sphi 0, %s31
    %s35 = sphi 0, %s34
    %s51 = sphi 0, %s35
    %s59 = sphi 0, %s61
    %s62 = sphi 0, %s59
    %s63 = sphi 0, %s62
    %s79 = sphi 0, %s63
    %s87 = sphi 0, %s89
    %s90 = sphi 0, %s87
    %s91 = sphi 0, %s90
    %s107 = sphi 0, %s91
    %s115 = sphi 0, %s117
    %s118 = sphi 0, %s115
    %s119 = sphi 0, %s118
    %s135 = sphi 0, %s119
  $region4: #{_shell_provider_static.1} parent=0 // loop_header_branch
    %12 = sbr.rel (%p10) target = $region8
  $region5: #{_shell_provider_static.1} parent=0 // loop_body
    %s14 = ssub.s32 %s9, 1
    %s15 = ssub.s32 %s9, 2
    %s22 = sadd.s32 1, %s17
    %p23 = scmp.ge.s32.totalorder %s22, 1
    %s24 = scalar_select %p23, 0, %s22
    %s25 = sadd.s32 1, %s16
    %s26 = scalar_select %p23, %s25, %s16
    %p27 = scmp.ge.s32.totalorder %s26, 2
    %s28 = scalar_select %p27, 0, %s26
    %s29 = ssub.s32 %s16, %s28
    %p30 = scmp.eq.s32.totalorder %s29, 0
    %s32 = sadd.s32 %s31, 1
    %s33 = scalar_select %p30, %s31, %s32
    %p36 = pneg %p30
    %p37 = scmp.eq.s32.totalorder %s9, 1
    %p38 = por %p36, %p37
    %p39 = scmp.ne.s32.totalorder %s31, %s34
    %p40 = scmp.eq.s32.totalorder %s9, 0
    %p41 = por %p39, %p40
    %p42 = scmp.ne.s32.totalorder %s31, %s34
    %p43 = scmp.eq.s32.totalorder %s14, 1
    %p44 = por %p42, %p43
    %p45 = scmp.ne.s32.totalorder %s34, %s35
    %p46 = scmp.eq.s32.totalorder %s14, 0
    %p47 = por %p45, %p46
    %p48 = scmp.ne.s32.totalorder %s34, %s35
    %p49 = scmp.eq.s32.totalorder %s15, 1
    %p50 = por %p48, %p49
    %p52 = scmp.ne.s32.totalorder %s35, %s51
    %p53 = scmp.eq.s32.totalorder %s15, 0
    %p54 = por %p52, %p53
    %s55 = ssub.s32 %s16, %s28
    %s56 = ssub.s32 %s17, %s24
    %s57 = sor.u32 %s55, %s56
    %p58 = scmp.eq.s32.totalorder %s57, 0
    %s60 = sadd.s32 %s59, 1
    %s61 = scalar_select %p58, %s59, %s60
    %p64 = pneg %p58
    %p65 = scmp.eq.s32.totalorder %s9, 1
    %p66 = por %p64, %p65
    %p67 = scmp.ne.s32.totalorder %s59, %s62
    %p68 = scmp.eq.s32.totalorder %s9, 0
    %p69 = por %p67, %p68
    %p70 = scmp.ne.s32.totalorder %s59, %s62
    %p71 = scmp.eq.s32.totalorder %s14, 1
    %p72 = por %p70, %p71
    %p73 = scmp.ne.s32.totalorder %s62, %s63
    %p74 = scmp.eq.s32.totalorder %s14, 0
    %p75 = por %p73, %p74
    %p76 = scmp.ne.s32.totalorder %s62, %s63
    %p77 = scmp.eq.s32.totalorder %s15, 1
    %p78 = por %p76, %p77
    %p80 = scmp.ne.s32.totalorder %s63, %s79
    %p81 = scmp.eq.s32.totalorder %s15, 0
    %p82 = por %p80, %p81
    %s83 = ssub.s32 %s16, %s28
    %s84 = ssub.s32 %s17, %s24
    %s85 = sor.u32 %s83, %s84
    %p86 = scmp.eq.s32.totalorder %s85, 0
    %s88 = sadd.s32 %s87, 1
    %s89 = scalar_select %p86, %s87, %s88
    %p92 = pneg %p86
    %p93 = scmp.eq.s32.totalorder %s9, 1
    %p94 = por %p92, %p93
    %p95 = scmp.ne.s32.totalorder %s87, %s90
    %p96 = scmp.eq.s32.totalorder %s9, 0
    %p97 = por %p95, %p96
    %p98 = scmp.ne.s32.totalorder %s87, %s90
    %p99 = scmp.eq.s32.totalorder %s14, 1
    %p100 = por %p98, %p99
    %p101 = scmp.ne.s32.totalorder %s90, %s91
    %p102 = scmp.eq.s32.totalorder %s14, 0
    %p103 = por %p101, %p102
    %p104 = scmp.ne.s32.totalorder %s90, %s91
    %p105 = scmp.eq.s32.totalorder %s15, 1
    %p106 = por %p104, %p105
    %p108 = scmp.ne.s32.totalorder %s91, %s107
    %p109 = scmp.eq.s32.totalorder %s15, 0
    %p110 = por %p108, %p109
    %s111 = ssub.s32 %s16, %s28
    %s112 = ssub.s32 %s17, %s24
    %s113 = sor.u32 %s111, %s112
    %p114 = scmp.eq.s32.totalorder %s113, 0
    %s116 = sadd.s32 %s115, 1
    %s117 = scalar_select %p114, %s115, %s116
    %p120 = pneg %p114
    %p121 = scmp.eq.s32.totalorder %s9, 1
    %p122 = por %p120, %p121
    %p123 = scmp.ne.s32.totalorder %s115, %s118
    %p124 = scmp.eq.s32.totalorder %s9, 0
    %p125 = por %p123, %p124
    %p126 = scmp.ne.s32.totalorder %s115, %s118
    %p127 = scmp.eq.s32.totalorder %s14, 1
    %p128 = por %p126, %p127
    %p129 = scmp.ne.s32.totalorder %s118, %s119
    %p130 = scmp.eq.s32.totalorder %s14, 0
    %p131 = por %p129, %p130
    %p132 = scmp.ne.s32.totalorder %s118, %s119
    %p133 = scmp.eq.s32.totalorder %s15, 1
    %p134 = por %p132, %p133
    %p136 = scmp.ne.s32.totalorder %s119, %s135
    %p137 = scmp.eq.s32.totalorder %s15, 0
    %p138 = por %p136, %p137
    %p139 = scmp.le.s32.totalorder 1, %s9
    %p140 = scmp.lt.s32.totalorder %s9, 3
    %p141 = pnand %p139, %p140
    %p142 = pneg %p141
    // Predicated region
    $region9: #{_shell_provider_static.1} parent=5 // pred_check
      _
    $region10: #{_shell_provider_static.1} parent=5 // pred_check_branch
      %144 = sbr.rel (%p141) target = $region12
    $region11: #{_shell_provider_static.1} parent=5 // pred_region
      %s145 = ssub.s32 %s9, 1
    $region12: #{_shell_provider_static.1} parent=5 // pred_fallthru
      _
    %p146 = scmp.lt.s32.totalorder %s9, 2
    // Predicated region
    $region13: #{_shell_provider_static.1} parent=5 // pred_check
      %p147 = pneg %p146
    $region14: #{_shell_provider_static.1} parent=5 // pred_check_branch
      %149 = sbr.rel (%p147) target = $region16
    $region15: #{_shell_provider_static.1} parent=5 // pred_region
      // Predicated region
      $region17: #{_shell_provider_static.1} parent=15 // pred_check
        %p150 = pneg %p41
      $region18: #{_shell_provider_static.1} parent=15 // pred_check_branch
        %152 = sbr.rel (%p150) target = $region20
      $region19: #{_shell_provider_static.1} parent=15 // pred_region
        %p153 = scmp.lt.s32.totalorder %s16, 1
        %s154 = scalar_select %p153, %s16, 1
        %s155 = smul.addr %s154, 4
        %s156 = scalar_lea.vmem %s0, %s155
      $region20: #{_shell_provider_static.1} parent=15 // pred_fallthru
        _
      // Predicated region
      $region21: #{_shell_provider_static.1} parent=15 // pred_check
        %p157 = pneg %p69
      $region22: #{_shell_provider_static.1} parent=15 // pred_check_branch
        %159 = sbr.rel (%p157) target = $region24
      $region23: #{_shell_provider_static.1} parent=15 // pred_region
        %p160 = scmp.lt.s32.totalorder %s16, 1
        %s161 = scalar_select %p160, %s16, 1
        %p162 = scmp.lt.s32.totalorder %s17, 0
        %s163 = scalar_select %p162, %s17, 0
        %s164 = sadd.s32 %s163, %s161
        %s165 = scalar_lea.vmem %s1, %s164
      $region24: #{_shell_provider_static.1} parent=15 // pred_fallthru
        _
      // Predicated region
      $region25: #{_shell_provider_static.1} parent=15 // pred_check
        %p166 = pneg %p97
      $region26: #{_shell_provider_static.1} parent=15 // pred_check_branch
        %168 = sbr.rel (%p166) target = $region28
      $region27: #{_shell_provider_static.1} parent=15 // pred_region
        %p169 = scmp.lt.s32.totalorder %s16, 1
        %s170 = scalar_select %p169, %s16, 1
        %p171 = scmp.lt.s32.totalorder %s17, 0
        %s172 = scalar_select %p171, %s17, 0
        %s173 = sadd.s32 %s172, %s170
        %s174 = scalar_lea.vmem %s2, %s173
      $region28: #{_shell_provider_static.1} parent=15 // pred_fallthru
        _
    $region16: #{_shell_provider_static.1} parent=5 // pred_fallthru
      _
    %p175 = scmp.le.s32.totalorder 1, %s9
    %p176 = scmp.lt.s32.totalorder %s9, 3
    %p177 = pnand %p175, %p176
    %p178 = pneg %p177
    // Predicated region
    $region29: #{_shell_provider_static.1} parent=5 // pred_check
      _
    $region30: #{_shell_provider_static.1} parent=5 // pred_check_branch
      %180 = sbr.rel (%p177) target = $region32
    $region31: #{_shell_provider_static.1} parent=5 // pred_region
      %s181 = ssub.s32 %s9, 1
      %p182 = scmp.lt.s32.totalorder %s18, 1
      %s183 = scalar_select %p182, %s18, 1
      %s184 = smul.addr %s183, 4
      %s185 = scalar_lea.vmem %s0, %s184
      %p186 = pneg %p47
      %p187 = pneg %p44
      %p188 = scmp.lt.s32.totalorder %s18, 1
      %s189 = scalar_select %p188, %s18, 1
      %p190 = scmp.lt.s32.totalorder %s19, 0
      %s191 = scalar_select %p190, %s19, 0
      %s192 = sadd.s32 %s191, %s189
      %s193 = scalar_lea.vmem %s1, %s192
      %p194 = pneg %p75
      %p195 = pneg %p72
      %p196 = scmp.lt.s32.totalorder %s18, 1
      %s197 = scalar_select %p196, %s18, 1
      %p198 = scmp.lt.s32.totalorder %s19, 0
      %s199 = scalar_select %p198, %s19, 0
      %s200 = sadd.s32 %s199, %s197
      %s201 = scalar_lea.vmem %s2, %s200
      %p202 = pneg %p103
      %p203 = pneg %p100
      %p204 = pneg %p131
      %p205 = pneg %p128
      %p206 = scmp.lt.s32.totalorder %s18, 1
      %s207 = scalar_select %p206, %s18, 1
      %p208 = scmp.lt.s32.totalorder %s19, 0
      %s209 = scalar_select %p208, %s19, 0
      %s210 = sadd.s32 %s209, %s207
      %s211 = smul.addr %s210, 4
      %s212 = scalar_lea.vmem %s3, %s211
      %p213 = scmp.lt.s32.totalorder %s18, 1
      %s214 = scalar_select %p213, %s18, 1
      %s215 = smul.addr %s214, 4
      %s216 = scalar_lea.vmem %s0, %s215
      %p217 = scmp.lt.s32.totalorder %s18, 1
      %s218 = scalar_select %p217, %s18, 1
      %p219 = scmp.lt.s32.totalorder %s19, 0
      %s220 = scalar_select %p219, %s19, 0
      %s221 = sadd.s32 %s220, %s218
      %s222 = scalar_lea.vmem %s1, %s221
      %p223 = scmp.lt.s32.totalorder %s18, 1
      %s224 = scalar_select %p223, %s18, 1
      %p225 = scmp.lt.s32.totalorder %s19, 0
      %s226 = scalar_select %p225, %s19, 0
      %s227 = sadd.s32 %s226, %s224
      %s228 = scalar_lea.vmem %s2, %s227
      %p229 = scmp.lt.s32.totalorder %s18, 1
      %s230 = scalar_select %p229, %s18, 1
      %p231 = scmp.lt.s32.totalorder %s19, 0
      %s232 = scalar_select %p231, %s19, 0
      %s233 = sadd.s32 %s232, %s230
      %s234 = smul.addr %s233, 4
      %s235 = scalar_lea.vmem %s3, %s234
      %v236 = vld [vmem:[%s216] sm:$0x7]
      %v237 = vld [vmem:[%s222] sm:$0x1]
      %v238 = vld [vmem:[%s228] sm:$0x1]
      %s239 = smul.u32 %s19, 8
      %v240 = vlaneseq
      %v241 = vshrl.u32 %v240, 7
      %v242 = vlaneseq
      %v243 = vand.u32 %v242, 127
      %v244 = vshra.s32 %v243, 3
      %v245 = vstv %s239
      %v246 = vadd.s32 %v245, %v244
      %v247 = vlaneseq
      %v248 = vshrl.u32 %v247, 7
      %v249 = vsub.s32 0, %v248
      %v250 = vrot.slane %v237, %v249
      %vm251 = vcmp.eq.s32.totalorder %v241, %v250
      %v252 = vsel %vm251, 1, 0
      %v253 = vcvt.s32.f32 %v252
      %vm254 = vcmp.eq.s32.totalorder %v241, %v246
      %v255 = vsel %vm254, 1, 0
      %v256 = vcvt.s32.f32 %v255
      %v257 = vsub.f32 %v253, %v256
      %vm258 = vcmask 64512
      %v260 = vsel %vm258, %v236, 0
      %262 = vmatprep.subr.mxu0 0.0
      %263 = vmatpush1.msra.mxu0 %v257
      %264 = vmatprep.subr.mxu0 0.0
      %265 = vmatpush1.msra.mxu0 0.0
      %266 = vmatprep.subr.mxu0 0.0
      %267 = vmatpush1.msra.mxu0 0.0
      %268 = vmatprep.subr.mxu0 0.0
      %269 = vmatpush1.msra.mxu0 0.0
      %270 = vmatprep.subr.mxu0 0.0
      %271 = vmatpush1.msra.mxu0 0.0
      %272 = vmatprep.subr.mxu0 0.0
      %273 = vmatpush1.msra.mxu0 0.0
      %274 = vmatprep.subr.mxu0 0.0
      %275 = vmatpush1.msra.mxu0 0.0
      %276 = vmatprep.subr.mxu0 0.0
      %277 = vmatpush1.msra.mxu0 0.0
      %278 = vmatprep.subr.mxu0 0.0
      %279 = vmatpush1.msra.mxu0 0.0
      %280 = vmatprep.subr.mxu0 0.0
      %281 = vmatpush1.msra.mxu0 0.0
      %282 = vmatprep.subr.mxu0 0.0
      %283 = vmatpush1.msra.mxu0 0.0
      %284 = vmatprep.subr.mxu0 0.0
      %285 = vmatpush1.msra.mxu0 0.0
      %286 = vmatprep.subr.mxu0 0.0
      %287 = vmatpush1.msra.mxu0 0.0
      %288 = vmatprep.subr.mxu0 0.0
      %289 = vmatpush1.msra.mxu0 0.0
      %290 = vmatprep.subr.mxu0 0.0
      %291 = vmatpush1.msra.mxu0 0.0
      %292 = vmatprep.subr.mxu0 0.0
      %293 = vmatpush1.msra.mxu0 0.0
      %294 = vmatprep.subr.mxu0 0.0
      %295 = vmatpush1.msra.mxu0 0.0
      %296 = vmatprep.subr.mxu0 0.0
      %297 = vmatpush1.msra.mxu0 0.0
      %298 = vmatprep.subr.mxu0 0.0
      %299 = vmatpush1.msra.mxu0 0.0
      %300 = vmatprep.subr.mxu0 0.0
      %301 = vmatpush1.msra.mxu0 0.0
      %302 = vmatprep.subr.mxu0 0.0
      %303 = vmatpush1.msra.mxu0 0.0
      %304 = vmatprep.subr.mxu0 0.0
      %305 = vmatpush1.msra.mxu0 0.0
      %306 = vmatprep.subr.mxu0 0.0
      %307 = vmatpush1.msra.mxu0 0.0
      %308 = vmatprep.subr.mxu0 0.0
      %309 = vmatpush1.msra.mxu0 0.0
      %310 = vmatprep.subr.mxu0 0.0
      %311 = vmatpush1.msra.mxu0 0.0
      %312 = vmatprep.subr.mxu0 0.0
      %313 = vmatpush1.msra.mxu0 0.0
      %314 = vmatprep.subr.mxu0 0.0
      %315 = vmatpush1.msra.mxu0 0.0
      %316 = vmatprep.subr.mxu0 0.0
      %317 = vmatpush1.msra.mxu0 0.0
      %318 = vmatprep.subr.mxu0 0.0
      %319 = vmatpush1.msra.mxu0 0.0
      %320 = vmatprep.subr.mxu0 0.0
      %321 = vmatpush1.msra.mxu0 0.0
      %322 = vmatprep.subr.mxu0 0.0
      %323 = vmatpush1.msra.mxu0 0.0
      %324 = vmatprep.subr.mxu0 0.0
      %325 = vmatpush1.msra.mxu0 0.0
      %326 = vmatprep.mubr.f32.mxu0 0.0
      %327 = vmatmul.mubr.f32.gmra.mrb[0].mxu0 %v260
      %v328 = vpop.f32.mrb[0].mxu0
      %v329 = vadd.f32 0.0, %v328
      %v330 = vpop.f32.mrb[0].mxu0
      %331 = vdwg.mxu0
      %v332 = vmul.f32 %v329, %v329
      %vm333 = vcmask 518144
      %v334 = vsel %vm333, %v332, 0.0
      %v335 = vrot.slane %v334, 4
      %v336 = vadd.f32 %v334, %v335
      %v337 = vrot.slane %v336, 2
      %v338 = vadd.f32 %v336, %v337
      %v339 = vrot.slane %v338, 1
      %v340 = vadd.f32 %v338, %v339
      %v341 = vrsqrt.pop %v340
      %v342 = vmul.f32 %v340, %v341
      %vm343 = vcmp.eq.f32.partialorder %v340, inf
      %v344 = vsel %vm343, %v340, %v342
      %vm345 = vcmp.eq.f32.partialorder %v340, 0.0
      %v346 = vand.u32 %v340, 2147483648
      %v347 = vsel %vm345, %v346, %v344
      %vm348 = vcmp.ne.f32.partialorder %v238, 0.0
      %v349 = vsel %vm348, %v347, 0.0
      %v351 = vlaneseq
      %v352 = vshrl.u32 %v351, 7
      %v353 = vsub.s32 0, %v352
      %v354 = vrot.slane %v349, %v353
      %vm356 = vcmask 1042432
      %v357 = vsel %vm356, %v329, %v354
      %vm358 = vcmask 519168
      %359 = vst.msk [vmem:[%s235] sm:$0xf] %vm358, %v357
      %p360 = scmp.lt.s32.totalorder %s18, 1
      %s361 = scalar_select %p360, %s18, 1
      %p362 = scmp.lt.s32.totalorder %s19, 0
      %s363 = scalar_select %p362, %s19, 0
      %s364 = sadd.s32 %s363, %s361
      %s365 = smul.addr %s364, 4
      %s366 = scalar_lea.vmem %s3, %s365
      // Predicated region
      $region33: #{_shell_provider_static.1} parent=31 // pred_check
        %p367 = pneg %p128
      $region34: #{_shell_provider_static.1} parent=31 // pred_check_branch
        %369 = sbr.rel (%p367) target = $region36
      $region35: #{_shell_provider_static.1} parent=31 // pred_region
        _
      $region36: #{_shell_provider_static.1} parent=31 // pred_fallthru
        _
    $region32: #{_shell_provider_static.1} parent=5 // pred_fallthru
      _
    %p370 = scmp.le.s32.totalorder 2, %s9
    // Predicated region
    $region37: #{_shell_provider_static.1} parent=5 // pred_check
      %p371 = pneg %p370
    $region38: #{_shell_provider_static.1} parent=5 // pred_check_branch
      %373 = sbr.rel (%p371) target = $region40
    $region39: #{_shell_provider_static.1} parent=5 // pred_region
      %s374 = ssub.s32 %s9, 2
      // Predicated region
      $region41: #{_shell_provider_static.1} parent=39 // pred_check
        %p375 = pneg %p134
      $region42: #{_shell_provider_static.1} parent=39 // pred_check_branch
        %377 = sbr.rel (%p375) target = $region44
      $region43: #{_shell_provider_static.1} parent=39 // pred_region
        %p378 = scmp.lt.s32.totalorder %s20, 1
        %s379 = scalar_select %p378, %s20, 1
        %p380 = scmp.lt.s32.totalorder %s21, 0
        %s381 = scalar_select %p380, %s21, 0
        %s382 = sadd.s32 %s381, %s379
        %s383 = smul.addr %s382, 4
        %s384 = scalar_lea.vmem %s3, %s383
      $region44: #{_shell_provider_static.1} parent=39 // pred_fallthru
        _
    $region40: #{_shell_provider_static.1} parent=5 // pred_fallthru
      _
  $region6: #{_shell_provider_static.1} parent=0 // loop_footer
    %s13 = sadd.s32 1, %s9
  $region7: #{_shell_provider_static.1} parent=0 // loop_footer_branch
    %8 = sbr.rel target = $region3
  $region8: #{_shell_provider_static.1} parent=0 // loop_exit
    _

</llo_original>
